<compile_context>
chip_gen: v7x
topology: tpu7x:2x2x1
jax: 0.10.0
libtpu: 0.0.40
codegen_flags: <defaults>
</compile_context>

<pallas_src>
import functools

import jax
import jax.numpy as jnp
from jax.experimental import pallas as pl
from jax.experimental.pallas import tpu as pltpu

LRELU_SLOPE = 0.2
BN_EPS = 1e-5


def _round_up(x, m):
    return ((x + m - 1) // m) * m


@functools.lru_cache(maxsize=1)
def _budgets():
    """Per-generation tile policy: v5e/v6e have 128 MiB VMEM (big tiles), v7x only 64 MiB."""
    vmem_cap = 64 * 1024 * 1024
    try:
        cap = getattr(pltpu.get_tpu_info(), "vmem_capacity_bytes", None)
        if cap:
            vmem_cap = int(cap)
    except Exception:
        pass  # conservative fallback below is safe on every generation
    if vmem_cap >= 100 * 1024 * 1024:                    # v5e / v6e (128 MiB physical)
        return {"vmem_limit": 64 * 1024 * 1024,
                "tile_budget": 20 * 1024 * 1024,
                "tm_cap": 1024}
    return {"vmem_limit": 44 * 1024 * 1024,              # v7x (64 MiB physical, 2 TCs)
            "tile_budget": 10 * 1024 * 1024,
            "tm_cap": 512}


def _pick_tile_m(m, k, oc, b):
    """Matmul row tile: multiple of 16 (bf16 sublane packing), fits the double-buffered
    VMEM budget, and leaves >=2 grid steps when possible (megacore / v7x dual-TC)."""
    mult = 16 if m >= 16 else 8
    tm = min(b["tm_cap"], _round_up(m, mult))
    while tm > mult and 2 * tm * (k * 2 + oc * 4) + 2 * k * oc * 2 > b["tile_budget"]:
        tm = max(mult, _round_up(tm // 2, mult))
    if tm >= m and m > mult:                             # guarantee at least 2 grid steps
        tm = max(mult, _round_up((m + 1) // 2, mult))
    return tm


def _pick_tile_rows(rows, lanes, b):
    """Row tile for the lane-dense elementwise (BN+LReLU) pass."""
    mult = 16 if rows >= 16 else 8
    tr = min(4 * b["tm_cap"], _round_up(rows, mult))
    while tr > mult and 2 * tr * lanes * 4 > b["tile_budget"]:
        tr = max(mult, _round_up(tr // 2, mult))
    if tr >= rows and rows > mult:
        tr = max(mult, _round_up((rows + 1) // 2, mult))
    return tr


# ------------------------- Pallas kernels -------------------------

def _conv_bias_act_kernel(x_ref, w_ref, b_ref, o_ref, *, apply_leaky):
    """One M-tile of the im2col conv: bf16 MXU matmul + bias, optional fused LeakyReLU."""
    acc = jnp.dot(x_ref[...], w_ref[...], preferred_element_type=jnp.float32)
    acc = acc + b_ref[...]
    if apply_leaky:
        acc = jnp.where(acc > 0, acc, LRELU_SLOPE * acc)
    o_ref[...] = acc.astype(o_ref.dtype)


def _conv_stats_kernel(x_ref, w_ref, o_ref, s_ref, ss_ref, *, m_total, tm):
    """One M-tile of the conv feeding BatchNorm: matmul, bf16 store, f32 partial stats.
    Rows past the logical end (partial last block) are masked out of the stats."""
    acc = jnp.dot(x_ref[...], w_ref[...], preferred_element_type=jnp.float32)
    o_ref[...] = acc.astype(o_ref.dtype)
    row = jax.lax.broadcasted_iota(jnp.int32, acc.shape, 0) + pl.program_id(0) * tm
    acc = jnp.where(row < m_total, acc, 0.0)
    s_ref[0] = jnp.sum(acc, axis=0, keepdims=True)        # (1, OC) partial sum
    ss_ref[0] = jnp.sum(acc * acc, axis=0, keepdims=True)  # (1, OC) partial sum of squares


def _bn_lrelu_kernel(x_ref, scale_ref, shift_ref, o_ref):
    """Affine batch-norm (precomputed scale/shift) fused with LeakyReLU(0.2), f32 math."""
    y = x_ref[...].astype(jnp.float32) * scale_ref[...] + shift_ref[...]
    o_ref[...] = jnp.where(y > 0, y, LRELU_SLOPE * y).astype(o_ref.dtype)


# ------------------------- im2col (channels-last, bf16) -------------------------

def _im2col_nhwc(x_nhwc, kh, kw, stride, pad):
    """Patches with rows=(n,oh,ow) and cols ordered (kh, kw, c); keeps the input dtype."""
    n, h, w, c = x_nhwc.shape
    oh = (h + 2 * pad - kh) // stride + 1
    ow = (w + 2 * pad - kw) // stride + 1
    xp = jnp.pad(x_nhwc, ((0, 0), (pad, pad), (pad, pad), (0, 0)))
    cols = []
    for i in range(kh):
        for j in range(kw):
            cols.append(xp[:, i:i + stride * (oh - 1) + 1:stride,
                           j:j + stride * (ow - 1) + 1:stride, :])
    pat = jnp.stack(cols, axis=3).reshape(n * oh * ow, kh * kw * c)
    return pat, (n, oh, ow)


# ------------------------- Conv matmul wrappers -------------------------

def _conv_matmul(patches, wmat, bias, *, apply_leaky, out_dtype):
    m, k = patches.shape
    oc = wmat.shape[1]
    b = _budgets()
    tm = _pick_tile_m(m, k, oc, b)
    grid_m = pl.cdiv(m, tm)
    return pl.pallas_call(
        functools.partial(_conv_bias_act_kernel, apply_leaky=apply_leaky),
        out_shape=jax.ShapeDtypeStruct((m, oc), out_dtype),
        grid=(grid_m,),
        in_specs=[pl.BlockSpec((tm, k), lambda i: (i, 0)),
                  pl.BlockSpec((k, oc), lambda i: (0, 0)),
                  pl.BlockSpec((1, oc), lambda i: (0, 0))],
        out_specs=pl.BlockSpec((tm, oc), lambda i: (i, 0)),
        compiler_params=pltpu.CompilerParams(
            dimension_semantics=("parallel",),
            vmem_limit_bytes=b["vmem_limit"]),
    )(patches, wmat, bias)


def _conv_matmul_stats(patches, wmat):
    m, k = patches.shape
    oc = wmat.shape[1]
    b = _budgets()
    tm = _pick_tile_m(m, k, oc, b)
    grid_m = pl.cdiv(m, tm)
    return pl.pallas_call(
        functools.partial(_conv_stats_kernel, m_total=m, tm=tm),
        out_shape=(jax.ShapeDtypeStruct((m, oc), jnp.bfloat16),
                   jax.ShapeDtypeStruct((grid_m, 1, oc), jnp.float32),
                   jax.ShapeDtypeStruct((grid_m, 1, oc), jnp.float32)),
        grid=(grid_m,),
        in_specs=[pl.BlockSpec((tm, k), lambda i: (i, 0)),
                  pl.BlockSpec((k, oc), lambda i: (0, 0))],
        out_specs=(pl.BlockSpec((tm, oc), lambda i: (i, 0)),
                   pl.BlockSpec((1, 1, oc), lambda i: (i, 0, 0)),
                   pl.BlockSpec((1, 1, oc), lambda i: (i, 0, 0))),
        compiler_params=pltpu.CompilerParams(
            dimension_semantics=("parallel",),
            vmem_limit_bytes=b["vmem_limit"]),
    )(patches, wmat)


def _bn_lrelu(x, scale, shift):
    """BN scale/shift + LeakyReLU over a flat (M, OC) bf16 slab.  For OC < 128 the slab is
    reinterpreted lane-dense as (M*OC/128, 128) (free reshape) so stores are unmasked."""
    m, oc = x.shape
    b = _budgets()
    lanes = oc
    if oc < 128 and 128 % oc == 0 and (m * oc) % 128 == 0:
        lanes = 128
        rep = 128 // oc
        x = x.reshape((m * oc) // 128, 128)
        scale = jnp.tile(scale, rep)
        shift = jnp.tile(shift, rep)
    rows = x.shape[0]
    tr = _pick_tile_rows(rows, lanes, b)
    grid_r = pl.cdiv(rows, tr)
    y = pl.pallas_call(
        _bn_lrelu_kernel,
        out_shape=jax.ShapeDtypeStruct((rows, lanes), jnp.bfloat16),
        grid=(grid_r,),
        in_specs=[pl.BlockSpec((tr, lanes), lambda i: (i, 0)),
                  pl.BlockSpec((1, lanes), lambda i: (0, 0)),
                  pl.BlockSpec((1, lanes), lambda i: (0, 0))],
        out_specs=pl.BlockSpec((tr, lanes), lambda i: (i, 0)),
        compiler_params=pltpu.CompilerParams(
            dimension_semantics=("parallel",),
            vmem_limit_bytes=b["vmem_limit"]),
    )(x, scale.reshape(1, lanes), shift.reshape(1, lanes))
    return y.reshape(m, oc)


# ------------------------- Layer wrappers -------------------------

def conv2d_bias_act(x_nhwc, weight, bias, stride, *, act, out_dtype):
    """Conv2d(k=4, pad=1) + bias (+ LeakyReLU).  weight: (OC, IC, KH, KW) PyTorch layout."""
    oc, ic, kh, kw = weight.shape
    patches, (n, oh, ow) = _im2col_nhwc(x_nhwc, kh, kw, stride, 1)      # already bf16
    wmat = weight.transpose(2, 3, 1, 0).reshape(kh * kw * ic, oc).astype(jnp.bfloat16)
    bvec = bias if bias is not None else jnp.zeros((oc,), jnp.float32)
    bvec = bvec.astype(jnp.float32).reshape(1, oc)
    out = _conv_matmul(patches, wmat, bvec, apply_leaky=act, out_dtype=out_dtype)
    return out.reshape(n, oh, ow, oc)


def conv2d_bn_lrelu(x_nhwc, weight, gamma, beta, stride):
    """Conv2d (no bias) -> BatchNorm2d (training-mode batch stats) -> LeakyReLU(0.2)."""
    oc, ic, kh, kw = weight.shape
    patches, (n, oh, ow) = _im2col_nhwc(x_nhwc, kh, kw, stride, 1)      # already bf16
    wmat = weight.transpose(2, 3, 1, 0).reshape(kh * kw * ic, oc).astype(jnp.bfloat16)
    m = patches.shape[0]

    conv_out, s, ss = _conv_matmul_stats(patches, wmat)

    total = jnp.sum(s, axis=(0, 1))                       # (OC,) f32
    total_sq = jnp.sum(ss, axis=(0, 1))                   # (OC,) f32
    mean = total / m
    var = jnp.maximum(total_sq / m - mean * mean, 0.0)    # biased batch variance
    inv = gamma.astype(jnp.float32) / jnp.sqrt(var + BN_EPS)
    scale = inv
    shift = beta.astype(jnp.float32) - mean * inv

    out = _bn_lrelu(conv_out, scale, shift)               # bf16 (M, OC)
    return out.reshape(n, oh, ow, oc)


# ------------------------- Model (params + forward) -------------------------

def init_params(key, input_nc, ndf=16, n_layers=3):
    """Same layer structure as NLayerDiscriminator(input_nc, ndf, n_layers, BatchNorm2d):
    use_bias=False for the BatchNorm'd convs, bias on the first and last conv."""
    keys = jax.random.split(key, 2 * (n_layers + 2))
    kw = 4
    params = []

    def conv_w(k, oc, ic):
        return jax.random.normal(k, (oc, ic, kw, kw), jnp.float32) * 0.02

    # first conv: bias=True, LeakyReLU, no norm
    params.append(dict(w=conv_w(keys[0], ndf, input_nc),
                       b=jax.random.normal(keys[1], (ndf,), jnp.float32) * 0.02,
                       stride=2, bn=False, act=True))
    nf_mult = 1
    for nidx in range(1, n_layers):
        nf_mult_prev, nf_mult = nf_mult, min(2 ** nidx, 8)
        oc, ic = ndf * nf_mult, ndf * nf_mult_prev
        params.append(dict(w=conv_w(keys[2 * nidx], oc, ic), b=None,
                           gamma=jnp.ones((oc,), jnp.float32),
                           beta=jnp.zeros((oc,), jnp.float32),
                           stride=2, bn=True, act=True))
    nf_mult_prev, nf_mult = nf_mult, min(2 ** n_layers, 8)
    oc, ic = ndf * nf_mult, ndf * nf_mult_prev
    params.append(dict(w=conv_w(keys[2 * n_layers], oc, ic), b=None,
                       gamma=jnp.ones((oc,), jnp.float32),
                       beta=jnp.zeros((oc,), jnp.float32),
                       stride=1, bn=True, act=True))
    # final 1-channel prediction conv: bias=True, no norm, no activation
    params.append(dict(w=conv_w(keys[2 * n_layers + 2], 1, oc),
                       b=jax.random.normal(keys[2 * n_layers + 3], (1,), jnp.float32) * 0.02,
                       stride=1, bn=False, act=False))
    return params


def nlayer_discriminator_forward(params, x_nchw):
    # One NCHW->NHWC transpose and one bf16 cast for the whole network.
    x = jnp.transpose(x_nchw, (0, 2, 3, 1)).astype(jnp.bfloat16)
    last_idx = len(params) - 1
    for idx, p in enumerate(params):
        if p['bn']:
            x = conv2d_bn_lrelu(x, p['w'], p['gamma'], p['beta'], p['stride'])
        else:
            last = idx == last_idx
            out_dtype = jnp.float32 if last else jnp.bfloat16
            x = conv2d_bias_act(x, p['w'], p.get('b'), p['stride'],
                                act=p['act'], out_dtype=out_dtype)
    return jnp.transpose(x, (0, 3, 1, 2))                 # back to NCHW


# ------------------------- Pure-JAX reference (sanity check) -------------------------

def ref_forward(params, x):
    for p in params:
        y = jax.lax.conv_general_dilated(
            x, p['w'], (p['stride'], p['stride']), [(1, 1), (1, 1)],
            dimension_numbers=('NCHW', 'OIHW', 'NCHW'))
        if p.get('b') is not None:
            y = y + p['b'][None, :, None, None]
        if p['bn']:
            mean = y.mean(axis=(0, 2, 3), keepdims=True)
            var = ((y - mean) ** 2).mean(axis=(0, 2, 3), keepdims=True)
            y = (y - mean) / jnp.sqrt(var + BN_EPS)
            y = y * p['gamma'][None, :, None, None] + p['beta'][None, :, None, None]
        if p['act']:
            y = jnp.where(y > 0, y, LRELU_SLOPE * y)
        x = y
    return x


if __name__ == "__main__":
    key = jax.random.PRNGKey(0)
    k_x, k_p = jax.random.split(key)

    N, C_IN, H, W = 2, 4, 32, 32          # spatial must survive 5 convs (32->16->8->4->3->2)
    NDF, N_LAYERS = 16, 3

    x = jax.random.normal(k_x, (N, C_IN, H, W), jnp.float32)
    params = init_params(k_p, input_nc=C_IN, ndf=NDF, n_layers=N_LAYERS)

    out = nlayer_discriminator_forward(params, x)
    out = jax.block_until_ready(out)

    # Expected PatchGAN output: 32 -> 16 -> 8 -> 4 -> 3 -> 2, single channel.
    assert out.shape == (N, 1, 2, 2), out.shape

    ref = jax.block_until_ready(ref_forward(params, x))
    # NOTE: bf16 MXU operands (K up to 16*C) vs f32 reference -> a few-percent tolerance.
    assert jnp.allclose(out, ref, atol=5e-2, rtol=5e-2), (
        float(jnp.max(jnp.abs(out - ref))))

    print("KERNEL_OK")
</pallas_src>

<mosaic_0001>
module attributes {stable_mosaic.version = 11 : i64} {
  func.func @_conv_bias_act_kernel(%arg0: i32, %arg1: memref<256x64xbf16, #tpu.memory_space<vmem>>, %arg2: memref<64x16xbf16, #tpu.memory_space<vmem>>, %arg3: memref<1x16xf32, #tpu.memory_space<vmem>>, %arg4: memref<256x16xbf16, #tpu.memory_space<vmem>>) attributes {dimension_semantics = [#tpu.dimension_semantics<parallel>], iteration_bounds = array<i64: 2>, scalar_prefetch = 0 : i64, scratch_operands = 0 : i64, tpu.core_type = #tpu.core_type<tc>, window_params = [{transform_indices = @transform_0, window_bounds = array<i64: 256, 64>}, {pipeline_mode = #tpu.pipeline_mode<synchronous>, transform_indices = @transform_1, window_bounds = array<i64: 64, 16>}, {pipeline_mode = #tpu.pipeline_mode<synchronous>, transform_indices = @transform_2, window_bounds = array<i64: 1, 16>}, {transform_indices = @transform_3, window_bounds = array<i64: 256, 16>}]} {
    %c0 = arith.constant 0 : index
    %c0_0 = arith.constant 0 : index
    %0 = vector.load %arg1[%c0, %c0_0] : memref<256x64xbf16, #tpu.memory_space<vmem>>, vector<256x64xbf16>
    %c0_1 = arith.constant 0 : index
    %c0_2 = arith.constant 0 : index
    %1 = vector.load %arg2[%c0_1, %c0_2] : memref<64x16xbf16, #tpu.memory_space<vmem>>, vector<64x16xbf16>
    %cst = arith.constant dense<0.000000e+00> : vector<256x16xf32>
    %2 = tpu.matmul %0, %1, %cst {dimension_numbers = #tpu.dot_dimension_numbers<[1], [0], [0], [1], [0, 0, 1, 1], [], []>} : vector<256x64xbf16>, vector<64x16xbf16>, vector<256x16xf32> -> vector<256x16xf32>
    %c0_3 = arith.constant 0 : index
    %c0_4 = arith.constant 0 : index
    %3 = vector.load %arg3[%c0_3, %c0_4] : memref<1x16xf32, #tpu.memory_space<vmem>>, vector<1x16xf32>
    %4 = vector.broadcast %3 : vector<1x16xf32> to vector<256x16xf32>
    %5 = arith.addf %2, %4 : vector<256x16xf32>
    %cst_5 = arith.constant 0.000000e+00 : f32
    %6 = vector.broadcast %cst_5 : f32 to vector<256x16xf32>
    %7 = arith.cmpf ogt, %5, %6 : vector<256x16xf32>
    %cst_6 = arith.constant 2.000000e-01 : f32
    %8 = vector.broadcast %cst_6 : f32 to vector<256x16xf32>
    %9 = arith.mulf %8, %5 : vector<256x16xf32>
    %10 = arith.select %7, %5, %9 : vector<256x16xi1>, vector<256x16xf32>
    %11 = arith.truncf %10 : vector<256x16xf32> to vector<256x16xbf16>
    %c0_7 = arith.constant 0 : index
    %c0_8 = arith.constant 0 : index
    %12 = vector.load %arg4[%c0_7, %c0_8] : memref<256x16xbf16, #tpu.memory_space<vmem>>, vector<256x16xbf16>
    tpu.vector_store %arg4[%c0_7, %c0_8], %11 {strides = array<i32>} : memref<256x16xbf16, #tpu.memory_space<vmem>>, vector<256x16xbf16>,
    return
  }
  func.func @transform_0(%arg0: i32) -> (i32, i32) {
    %c0_i32 = arith.constant 0 : i32
    %c0_i32_0 = arith.constant 0 : i32
    return %arg0, %c0_i32 : i32, i32
  }
  func.func @transform_1(%arg0: i32) -> (i32, i32) {
    %c0_i32 = arith.constant 0 : i32
    %c0_i32_0 = arith.constant 0 : i32
    %c0_i32_1 = arith.constant 0 : i32
    return %c0_i32, %c0_i32_0 : i32, i32
  }
  func.func @transform_2(%arg0: i32) -> (i32, i32) {
    %c0_i32 = arith.constant 0 : i32
    %c0_i32_0 = arith.constant 0 : i32
    %c0_i32_1 = arith.constant 0 : i32
    return %c0_i32, %c0_i32_0 : i32, i32
  }
  func.func @transform_3(%arg0: i32) -> (i32, i32) {
    %c0_i32 = arith.constant 0 : i32
    %c0_i32_0 = arith.constant 0 : i32
    return %arg0, %c0_i32 : i32, i32
  }
}

</mosaic_0001>

<llo_original>
// kernel: tpu_custom_call.1
$region0: #{tpu_custom_call.1}
  #allocation0 [shape = 'u32[]', space=smem, size = 0x4, offset = 0x4, fixed_abs, tag = 'smem constant byte address 0x4 - core index']
  #allocation1 [shape = 'u32[144,128]{1,0:T(1,128)}', space=vmem, size = 0x12000, scoped, tag = 'internal scratch']
  %s0 = inlined_call_operand.vmem [shape: bf16[512,64], index: 0, kind: input, shape index: {}]
  %s1 = inlined_call_operand.vmem [shape: bf16[64,16], index: 1, kind: input, shape index: {}]
  %s2 = inlined_call_operand.vmem [shape: f32[1,16], index: 2, kind: input, shape index: {}]
  %s3 = inlined_call_operand.vmem [shape: bf16[512,16], index: 3, kind: output, shape index: {}]
  %s4 = sld [smem:[#allocation0]]
  $region45: #{tpu_custom_call.1} parent=0
    _
  %s6 = ssub.s32 1, %s4
  %s7 = scalar_select 0, %s6, %s4
  loop: start=0, step=1, limit=4
  $region2: #{tpu_custom_call.1} parent=0 // loop_pre_header
    _
  $region3: #{tpu_custom_call.1} parent=0 // loop_header
    %s9 = sphi 0, %s13
    %p10 = scmp.ge.s32.totalorder %s9, 4
    %s19 = sphi 0, %s21
    %s22 = sphi 0, %s19
    %s23 = sphi 0, %s22
    %s39 = sphi 0, %s23
    %s43 = sphi 0, %s43
    %s45 = sphi 0, %s43
    %s46 = sphi 0, %s45
    %s60 = sphi 0, %s46
    %s64 = sphi 0, %s64
    %s66 = sphi 0, %s64
    %s67 = sphi 0, %s66
    %s81 = sphi 0, %s67
    %s87 = sphi 0, %s89
    %s90 = sphi 0, %s87
    %s91 = sphi 0, %s90
    %s107 = sphi 0, %s91
  $region4: #{tpu_custom_call.1} parent=0 // loop_header_branch
    %12 = sbr.rel (%p10) target = $region8
  $region5: #{tpu_custom_call.1} parent=0 // loop_body
    %s14 = ssub.s32 %s9, 1
    %s15 = ssub.s32 %s9, 2
    %s16 = sadd.s32 %s9, 1
    %s17 = ssub.s32 %s9, %s16
    %p18 = scmp.eq.s32.totalorder %s17, 0
    %s20 = sadd.s32 %s19, 1
    %s21 = scalar_select %p18, %s19, %s20
    %p24 = pneg %p18
    %p25 = scmp.eq.s32.totalorder %s9, 1
    %p26 = por %p24, %p25
    %p27 = scmp.ne.s32.totalorder %s19, %s22
    %p28 = scmp.eq.s32.totalorder %s9, 0
    %p29 = por %p27, %p28
    %p30 = scmp.ne.s32.totalorder %s19, %s22
    %p31 = scmp.eq.s32.totalorder %s14, 1
    %p32 = por %p30, %p31
    %p33 = scmp.ne.s32.totalorder %s22, %s23
    %p34 = scmp.eq.s32.totalorder %s14, 0
    %p35 = por %p33, %p34
    %p36 = scmp.ne.s32.totalorder %s22, %s23
    %p37 = scmp.eq.s32.totalorder %s15, 1
    %p38 = por %p36, %p37
    %p40 = scmp.ne.s32.totalorder %s23, %s39
    %p41 = scmp.eq.s32.totalorder %s15, 0
    %p42 = por %p40, %p41
    %s44 = sadd.s32 %s43, 1
    %p47 = scmp.eq.s32.totalorder %s9, 1
    %p48 = scmp.ne.s32.totalorder %s43, %s45
    %p49 = scmp.eq.s32.totalorder %s9, 0
    %p50 = por %p48, %p49
    %p51 = scmp.ne.s32.totalorder %s43, %s45
    %p52 = scmp.eq.s32.totalorder %s14, 1
    %p53 = por %p51, %p52
    %p54 = scmp.ne.s32.totalorder %s45, %s46
    %p55 = scmp.eq.s32.totalorder %s14, 0
    %p56 = por %p54, %p55
    %p57 = scmp.ne.s32.totalorder %s45, %s46
    %p58 = scmp.eq.s32.totalorder %s15, 1
    %p59 = por %p57, %p58
    %p61 = scmp.ne.s32.totalorder %s46, %s60
    %p62 = scmp.eq.s32.totalorder %s15, 0
    %p63 = por %p61, %p62
    %s65 = sadd.s32 %s64, 1
    %p68 = scmp.eq.s32.totalorder %s9, 1
    %p69 = scmp.ne.s32.totalorder %s64, %s66
    %p70 = scmp.eq.s32.totalorder %s9, 0
    %p71 = por %p69, %p70
    %p72 = scmp.ne.s32.totalorder %s64, %s66
    %p73 = scmp.eq.s32.totalorder %s14, 1
    %p74 = por %p72, %p73
    %p75 = scmp.ne.s32.totalorder %s66, %s67
    %p76 = scmp.eq.s32.totalorder %s14, 0
    %p77 = por %p75, %p76
    %p78 = scmp.ne.s32.totalorder %s66, %s67
    %p79 = scmp.eq.s32.totalorder %s15, 1
    %p80 = por %p78, %p79
    %p82 = scmp.ne.s32.totalorder %s67, %s81
    %p83 = scmp.eq.s32.totalorder %s15, 0
    %p84 = por %p82, %p83
    %s85 = ssub.s32 %s9, %s16
    %p86 = scmp.eq.s32.totalorder %s85, 0
    %s88 = sadd.s32 %s87, 1
    %s89 = scalar_select %p86, %s87, %s88
    %p92 = pneg %p86
    %p93 = scmp.eq.s32.totalorder %s9, 1
    %p94 = por %p92, %p93
    %p95 = scmp.ne.s32.totalorder %s87, %s90
    %p96 = scmp.eq.s32.totalorder %s9, 0
    %p97 = por %p95, %p96
    %p98 = scmp.ne.s32.totalorder %s87, %s90
    %p99 = scmp.eq.s32.totalorder %s14, 1
    %p100 = por %p98, %p99
    %p101 = scmp.ne.s32.totalorder %s90, %s91
    %p102 = scmp.eq.s32.totalorder %s14, 0
    %p103 = por %p101, %p102
    %p104 = scmp.ne.s32.totalorder %s90, %s91
    %p105 = scmp.eq.s32.totalorder %s15, 1
    %p106 = por %p104, %p105
    %p108 = scmp.ne.s32.totalorder %s91, %s107
    %p109 = scmp.eq.s32.totalorder %s15, 0
    %p110 = por %p108, %p109
    %p111 = scmp.le.s32.totalorder 1, %s9
    %p112 = scmp.lt.s32.totalorder %s9, 3
    %p113 = pnand %p111, %p112
    %p114 = pneg %p113
    // Predicated region
    $region9: #{tpu_custom_call.1} parent=5 // pred_check
      _
    $region10: #{tpu_custom_call.1} parent=5 // pred_check_branch
      %116 = sbr.rel (%p113) target = $region12
    $region11: #{tpu_custom_call.1} parent=5 // pred_region
      %s117 = ssub.s32 %s9, 1
      // Predicated region
      $region13: #{tpu_custom_call.1} parent=11 // pred_check
        %p118 = pneg %p56
      $region14: #{tpu_custom_call.1} parent=11 // pred_check_branch
        %120 = sbr.rel (%p118) target = $region16
      $region15: #{tpu_custom_call.1} parent=11 // pred_region
        _
      $region16: #{tpu_custom_call.1} parent=11 // pred_fallthru
        _
      // Predicated region
      $region17: #{tpu_custom_call.1} parent=11 // pred_check
        %p121 = pneg %p77
      $region18: #{tpu_custom_call.1} parent=11 // pred_check_branch
        %123 = sbr.rel (%p121) target = $region20
      $region19: #{tpu_custom_call.1} parent=11 // pred_region
        _
      $region20: #{tpu_custom_call.1} parent=11 // pred_fallthru
        _
    $region12: #{tpu_custom_call.1} parent=5 // pred_fallthru
      _
    %p124 = scmp.lt.s32.totalorder %s9, 2
    // Predicated region
    $region21: #{tpu_custom_call.1} parent=5 // pred_check
      %p125 = pneg %p124
    $region22: #{tpu_custom_call.1} parent=5 // pred_check_branch
      %127 = sbr.rel (%p125) target = $region24
    $region23: #{tpu_custom_call.1} parent=5 // pred_region
      // Predicated region
      $region25: #{tpu_custom_call.1} parent=23 // pred_check
        %p128 = pneg %p29
      $region26: #{tpu_custom_call.1} parent=23 // pred_check_branch
        %130 = sbr.rel (%p128) target = $region28
      $region27: #{tpu_custom_call.1} parent=23 // pred_region
        %s131 = smul.u32 32, %s9
        %p132 = scmp.lt.s32.totalorder %s131, 63
        %s133 = scalar_select %p132, %s131, 63
        %s134 = smul.addr %s133, 4
        %s135 = scalar_lea.vmem %s0, %s134
        %s136 = smul.u32 32, %s9
      $region28: #{tpu_custom_call.1} parent=23 // pred_fallthru
        _
    $region24: #{tpu_custom_call.1} parent=5 // pred_fallthru
      _
    %p137 = scmp.le.s32.totalorder 1, %s9
    %p138 = scmp.lt.s32.totalorder %s9, 3
    %p139 = pnand %p137, %p138
    %p140 = pneg %p139
    // Predicated region
    $region29: #{tpu_custom_call.1} parent=5 // pred_check
      _
    $region30: #{tpu_custom_call.1} parent=5 // pred_check_branch
      %142 = sbr.rel (%p139) target = $region32
    $region31: #{tpu_custom_call.1} parent=5 // pred_region
      %s143 = ssub.s32 %s9, 1
      %s144 = smul.u32 32, %s14
      %p145 = scmp.lt.s32.totalorder %s144, 63
      %s146 = scalar_select %p145, %s144, 63
      %s147 = smul.addr %s146, 4
      %s148 = scalar_lea.vmem %s0, %s147
      %p149 = pneg %p35
      %p150 = pneg %p32
      %p151 = pneg %p56
      %p152 = pneg %p53
      %p153 = pneg %p77
      %p154 = pneg %p74
      %p155 = pneg %p103
      %p156 = pneg %p100
      %s157 = smul.u32 32, %s14
      %p158 = scmp.lt.s32.totalorder %s157, 63
      %s159 = scalar_select %p158, %s157, 63
      %s160 = smul.addr %s159, 4
      %s161 = scalar_lea.vmem %s3, %s160
      %s162 = smul.u32 32, %s14
      %p163 = scmp.lt.s32.totalorder %s162, 63
      %s164 = scalar_select %p163, %s162, 63
      %s165 = smul.addr %s164, 4
      %s166 = scalar_lea.vmem %s0, %s165
      %s167 = smul.u32 32, %s14
      %s168 = smul.u32 32, %s14
      %p169 = scmp.lt.s32.totalorder %s168, 63
      %s170 = scalar_select %p169, %s168, 63
      %s171 = smul.addr %s170, 4
      %s172 = scalar_lea.vmem %s3, %s171
      %s173 = smul.u32 32, %s14
      %v175 = vld [vmem:[%s166] sm:$0xf]
      %v176 = vld [vmem:[%s166 + $0x4] sm:$0xf]
      %v177 = vld [vmem:[%s166 + $0x8] sm:$0xf]
      %v178 = vld [vmem:[%s166 + $0xc] sm:$0xf]
      %v179 = vld [vmem:[%s166 + $0x10] sm:$0xf]
      %v180 = vld [vmem:[%s166 + $0x14] sm:$0xf]
      %v181 = vld [vmem:[%s166 + $0x18] sm:$0xf]
      %v182 = vld [vmem:[%s166 + $0x1c] sm:$0xf]
      %v183 = vld [vmem:[%s166 + $0x20] sm:$0xf]
      %v184 = vld [vmem:[%s166 + $0x24] sm:$0xf]
      %v185 = vld [vmem:[%s166 + $0x28] sm:$0xf]
      %v186 = vld [vmem:[%s166 + $0x2c] sm:$0xf]
      %v187 = vld [vmem:[%s166 + $0x30] sm:$0xf]
      %v188 = vld [vmem:[%s166 + $0x34] sm:$0xf]
      %v189 = vld [vmem:[%s166 + $0x38] sm:$0xf]
      %v190 = vld [vmem:[%s166 + $0x3c] sm:$0xf]
      %v191 = vld [vmem:[%s166 + $0x40] sm:$0xf]
      %v192 = vld [vmem:[%s166 + $0x44] sm:$0xf]
      %v193 = vld [vmem:[%s166 + $0x48] sm:$0xf]
      %v194 = vld [vmem:[%s166 + $0x4c] sm:$0xf]
      %v195 = vld [vmem:[%s166 + $0x50] sm:$0xf]
      %v196 = vld [vmem:[%s166 + $0x54] sm:$0xf]
      %v197 = vld [vmem:[%s166 + $0x58] sm:$0xf]
      %v198 = vld [vmem:[%s166 + $0x5c] sm:$0xf]
      %v199 = vld [vmem:[%s166 + $0x60] sm:$0xf]
      %v200 = vld [vmem:[%s166 + $0x64] sm:$0xf]
      %v201 = vld [vmem:[%s166 + $0x68] sm:$0xf]
      %v202 = vld [vmem:[%s166 + $0x6c] sm:$0xf]
      %v203 = vld [vmem:[%s166 + $0x70] sm:$0xf]
      %v204 = vld [vmem:[%s166 + $0x74] sm:$0xf]
      %v205 = vld [vmem:[%s166 + $0x78] sm:$0xf]
      %v206 = vld [vmem:[%s166 + $0x7c] sm:$0xf]
      %v207 = vld [vmem:[%s1] sm:$0xf]
      %v208 = vld [vmem:[%s1 + $0x4] sm:$0xf]
      %v209 = vld [vmem:[%s1 + $0x8] sm:$0xf]
      %v210 = vld [vmem:[%s1 + $0xc] sm:$0xf]
      %v211 = vld [vmem:[%s1 + $0x10] sm:$0xf]
      %v212 = vld [vmem:[%s1 + $0x14] sm:$0xf]
      %v213 = vld [vmem:[%s1 + $0x18] sm:$0xf]
      %v214 = vld [vmem:[%s1 + $0x1c] sm:$0xf]
      %v215 = vld [vmem:[%s2] sm:$0x1]
      %v217 = vlaneseq
      %v218 = vshrl.u32 %v217, 7
      %v219 = vsub.s32 0, %v218
      %v220 = vrot.slane %v215, %v219
      %v254 = vunpack.c.l.b16 %v175
      %v255 = vunpack.c.l.b16 %v176
      %v256 = vunpack.c.l.b16 %v177
      %v257 = vunpack.c.l.b16 %v178
      %v258 = vunpack.c.l.b16 %v179
      %v259 = vunpack.c.l.b16 %v180
      %v260 = vunpack.c.l.b16 %v181
      %v261 = vunpack.c.l.b16 %v182
      %v262 = vunpack.c.l.b16 %v183
      %v263 = vunpack.c.l.b16 %v184
      %v264 = vunpack.c.l.b16 %v185
      %v265 = vunpack.c.l.b16 %v186
      %v266 = vunpack.c.l.b16 %v187
      %v267 = vunpack.c.l.b16 %v188
      %v268 = vunpack.c.l.b16 %v189
      %v269 = vunpack.c.l.b16 %v190
      %v270 = vunpack.c.l.b16 %v191
      %v271 = vunpack.c.l.b16 %v192
      %v272 = vunpack.c.l.b16 %v193
      %v273 = vunpack.c.l.b16 %v194
      %v274 = vunpack.c.l.b16 %v195
      %v275 = vunpack.c.l.b16 %v196
      %v276 = vunpack.c.l.b16 %v197
      %v277 = vunpack.c.l.b16 %v198
      %v278 = vunpack.c.l.b16 %v199
      %v279 = vunpack.c.l.b16 %v200
      %v280 = vunpack.c.l.b16 %v201
      %v281 = vunpack.c.l.b16 %v202
      %v282 = vunpack.c.l.b16 %v203
      %v283 = vunpack.c.l.b16 %v204
      %v284 = vunpack.c.l.b16 %v205
      %v285 = vunpack.c.l.b16 %v206
      %v286 = vpack.c.b16 %v255, %v254
      %v287 = vpack.c.b16 %v257, %v256
      %v288 = vpack.c.b16 %v259, %v258
      %v289 = vpack.c.b16 %v261, %v260
      %v290 = vpack.c.b16 %v263, %v262
      %v291 = vpack.c.b16 %v265, %v264
      %v292 = vpack.c.b16 %v267, %v266
      %v293 = vpack.c.b16 %v269, %v268
      %v294 = vpack.c.b16 %v271, %v270
      %v295 = vpack.c.b16 %v273, %v272
      %v296 = vpack.c.b16 %v275, %v274
      %v297 = vpack.c.b16 %v277, %v276
      %v298 = vpack.c.b16 %v279, %v278
      %v299 = vpack.c.b16 %v281, %v280
      %v300 = vpack.c.b16 %v283, %v282
      %v301 = vpack.c.b16 %v285, %v284
      %v310 = vunpack.c.l.b16 %v207
      %v311 = vunpack.c.l.b16 %v208
      %v312 = vunpack.c.l.b16 %v209
      %v313 = vunpack.c.l.b16 %v210
      %v314 = vunpack.c.l.b16 %v211
      %v315 = vunpack.c.l.b16 %v212
      %v316 = vunpack.c.l.b16 %v213
      %v317 = vunpack.c.l.b16 %v214
      %v318 = vpack.c.b16 %v311, %v310
      %v319 = vpack.c.b16 %v313, %v312
      %v320 = vpack.c.b16 %v315, %v314
      %v321 = vpack.c.b16 %v317, %v316
      %vm326 = vcmask 523264
      %v328 = vsel %vm326, %v286, 0
      %v331 = vsel %vm326, %v287, 0
      %v334 = vsel %vm326, %v288, 0
      %v337 = vsel %vm326, %v289, 0
      %v340 = vsel %vm326, %v290, 0
      %v343 = vsel %vm326, %v291, 0
      %v346 = vsel %vm326, %v292, 0
      %v349 = vsel %vm326, %v293, 0
      %v352 = vsel %vm326, %v294, 0
      %v355 = vsel %vm326, %v295, 0
      %v358 = vsel %vm326, %v296, 0
      %v361 = vsel %vm326, %v297, 0
      %v364 = vsel %vm326, %v298, 0
      %v367 = vsel %vm326, %v299, 0
      %v370 = vsel %vm326, %v300, 0
      %v373 = vsel %vm326, %v301, 0
      %375 = vmatprep.subr.bf16.mxu0 0
      %376 = vmatpush1.bf16.msra.mxu0 %v318
      %377 = vmatprep.subr.bf16.mxu0 0
      %378 = vmatpush1.bf16.msra.mxu0 %v319
      %379 = vmatprep.subr.bf16.mxu0 0
      %380 = vmatpush1.bf16.msra.mxu0 %v320
      %381 = vmatprep.subr.bf16.mxu0 0
      %382 = vmatpush1.bf16.msra.mxu0 %v321
      %383 = vmatprep.subr.bf16.mxu0 0
      %384 = vmatpush1.bf16.msra.mxu0 0
      %385 = vmatprep.subr.bf16.mxu0 0
      %386 = vmatpush1.bf16.msra.mxu0 0
      %387 = vmatprep.subr.bf16.mxu0 0
      %388 = vmatpush1.bf16.msra.mxu0 0
      %389 = vmatprep.subr.bf16.mxu0 0
      %390 = vmatpush1.bf16.msra.mxu0 0
      %391 = vmatprep.subr.bf16.mxu0 0
      %392 = vmatpush1.bf16.msra.mxu0 0
      %393 = vmatprep.subr.bf16.mxu0 0
      %394 = vmatpush1.bf16.msra.mxu0 0
      %395 = vmatprep.subr.bf16.mxu0 0
      %396 = vmatpush1.bf16.msra.mxu0 0
      %397 = vmatprep.subr.bf16.mxu0 0
      %398 = vmatpush1.bf16.msra.mxu0 0
      %399 = vmatprep.subr.bf16.mxu0 0
      %400 = vmatpush1.bf16.msra.mxu0 0
      %401 = vmatprep.subr.bf16.mxu0 0
      %402 = vmatpush1.bf16.msra.mxu0 0
      %403 = vmatprep.subr.bf16.mxu0 0
      %404 = vmatpush1.bf16.msra.mxu0 0
      %405 = vmatprep.subr.bf16.mxu0 0
      %406 = vmatpush1.bf16.msra.mxu0 0
      %407 = vmatprep.mubr.bf16.mxu0 0
      %408 = vmatmul.mubr.bf16.gmra.mrb[0].mxu0 %v328
      %v409 = vpop.f32.mrb[0].mxu0
      %v410 = vadd.f32 %v220, %v409
      %v411 = vpop.f32.mrb[0].mxu0
      %v412 = vpop.f32.mrb[0].mxu0
      %v413 = vadd.f32 %v220, %v412
      %v414 = vpop.f32.mrb[0].mxu0
      %415 = vmatprep.mubr.bf16.mxu0 0
      %416 = vmatmul.mubr.bf16.gmra.mrb[0].mxu0 %v331
      %v417 = vpop.f32.mrb[0].mxu0
      %v418 = vadd.f32 %v220, %v417
      %v419 = vpop.f32.mrb[0].mxu0
      %v420 = vpop.f32.mrb[0].mxu0
      %v421 = vadd.f32 %v220, %v420
      %v422 = vpop.f32.mrb[0].mxu0
      %423 = vmatprep.mubr.bf16.mxu0 0
      %424 = vmatmul.mubr.bf16.gmra.mrb[0].mxu0 %v334
      %v425 = vpop.f32.mrb[0].mxu0
      %v426 = vadd.f32 %v220, %v425
      %v427 = vpop.f32.mrb[0].mxu0
      %v428 = vpop.f32.mrb[0].mxu0
      %v429 = vadd.f32 %v220, %v428
      %v430 = vpop.f32.mrb[0].mxu0
      %431 = vmatprep.mubr.bf16.mxu0 0
      %432 = vmatmul.mubr.bf16.gmra.mrb[0].mxu0 %v337
      %v433 = vpop.f32.mrb[0].mxu0
      %v434 = vadd.f32 %v220, %v433
      %v435 = vpop.f32.mrb[0].mxu0
      %v436 = vpop.f32.mrb[0].mxu0
      %v437 = vadd.f32 %v220, %v436
      %v438 = vpop.f32.mrb[0].mxu0
      %439 = vmatprep.mubr.bf16.mxu0 0
      %440 = vmatmul.mubr.bf16.gmra.mrb[0].mxu0 %v340
      %v441 = vpop.f32.mrb[0].mxu0
      %v442 = vadd.f32 %v220, %v441
      %v443 = vpop.f32.mrb[0].mxu0
      %v444 = vpop.f32.mrb[0].mxu0
      %v445 = vadd.f32 %v220, %v444
      %v446 = vpop.f32.mrb[0].mxu0
      %447 = vmatprep.mubr.bf16.mxu0 0
      %448 = vmatmul.mubr.bf16.gmra.mrb[0].mxu0 %v343
      %v449 = vpop.f32.mrb[0].mxu0
      %v450 = vadd.f32 %v220, %v449
      %v451 = vpop.f32.mrb[0].mxu0
      %v452 = vpop.f32.mrb[0].mxu0
      %v453 = vadd.f32 %v220, %v452
      %v454 = vpop.f32.mrb[0].mxu0
      %455 = vmatprep.mubr.bf16.mxu0 0
      %456 = vmatmul.mubr.bf16.gmra.mrb[0].mxu0 %v346
      %v457 = vpop.f32.mrb[0].mxu0
      %v458 = vadd.f32 %v220, %v457
      %v459 = vpop.f32.mrb[0].mxu0
      %v460 = vpop.f32.mrb[0].mxu0
      %v461 = vadd.f32 %v220, %v460
      %v462 = vpop.f32.mrb[0].mxu0
      %463 = vmatprep.mubr.bf16.mxu0 0
      %464 = vmatmul.mubr.bf16.gmra.mrb[0].mxu0 %v349
      %v465 = vpop.f32.mrb[0].mxu0
      %v466 = vadd.f32 %v220, %v465
      %v467 = vpop.f32.mrb[0].mxu0
      %v468 = vpop.f32.mrb[0].mxu0
      %v469 = vadd.f32 %v220, %v468
      %v470 = vpop.f32.mrb[0].mxu0
      %471 = vmatprep.mubr.bf16.mxu0 0
      %472 = vmatmul.mubr.bf16.gmra.mrb[0].mxu0 %v352
      %v473 = vpop.f32.mrb[0].mxu0
      %v474 = vadd.f32 %v220, %v473
      %v475 = vpop.f32.mrb[0].mxu0
      %v476 = vpop.f32.mrb[0].mxu0
      %v477 = vadd.f32 %v220, %v476
      %v478 = vpop.f32.mrb[0].mxu0
      %479 = vmatprep.mubr.bf16.mxu0 0
      %480 = vmatmul.mubr.bf16.gmra.mrb[0].mxu0 %v355
      %v481 = vpop.f32.mrb[0].mxu0
      %v482 = vadd.f32 %v220, %v481
      %v483 = vpop.f32.mrb[0].mxu0
      %v484 = vpop.f32.mrb[0].mxu0
      %v485 = vadd.f32 %v220, %v484
      %v486 = vpop.f32.mrb[0].mxu0
      %487 = vmatprep.mubr.bf16.mxu0 0
      %488 = vmatmul.mubr.bf16.gmra.mrb[0].mxu0 %v358
      %v489 = vpop.f32.mrb[0].mxu0
      %v490 = vadd.f32 %v220, %v489
      %v491 = vpop.f32.mrb[0].mxu0
      %v492 = vpop.f32.mrb[0].mxu0
      %v493 = vadd.f32 %v220, %v492
      %v494 = vpop.f32.mrb[0].mxu0
      %495 = vmatprep.mubr.bf16.mxu0 0
      %496 = vmatmul.mubr.bf16.gmra.mrb[0].mxu0 %v361
      %v497 = vpop.f32.mrb[0].mxu0
      %v498 = vadd.f32 %v220, %v497
      %v499 = vpop.f32.mrb[0].mxu0
      %v500 = vpop.f32.mrb[0].mxu0
      %v501 = vadd.f32 %v220, %v500
      %v502 = vpop.f32.mrb[0].mxu0
      %503 = vmatprep.mubr.bf16.mxu0 0
      %504 = vmatmul.mubr.bf16.gmra.mrb[0].mxu0 %v364
      %v505 = vpop.f32.mrb[0].mxu0
      %v506 = vadd.f32 %v220, %v505
      %v507 = vpop.f32.mrb[0].mxu0
      %v508 = vpop.f32.mrb[0].mxu0
      %v509 = vadd.f32 %v220, %v508
      %v510 = vpop.f32.mrb[0].mxu0
      %511 = vmatprep.mubr.bf16.mxu0 0
      %512 = vmatmul.mubr.bf16.gmra.mrb[0].mxu0 %v367
      %v513 = vpop.f32.mrb[0].mxu0
      %v514 = vadd.f32 %v220, %v513
      %v515 = vpop.f32.mrb[0].mxu0
      %v516 = vpop.f32.mrb[0].mxu0
      %v517 = vadd.f32 %v220, %v516
      %v518 = vpop.f32.mrb[0].mxu0
      %519 = vmatprep.mubr.bf16.mxu0 0
      %520 = vmatmul.mubr.bf16.gmra.mrb[0].mxu0 %v370
      %v521 = vpop.f32.mrb[0].mxu0
      %v522 = vadd.f32 %v220, %v521
      %v523 = vpop.f32.mrb[0].mxu0
      %v524 = vpop.f32.mrb[0].mxu0
      %v525 = vadd.f32 %v220, %v524
      %v526 = vpop.f32.mrb[0].mxu0
      %527 = vmatprep.mubr.bf16.mxu0 0
      %528 = vmatmul.mubr.bf16.gmra.mrb[0].mxu0 %v373
      %v529 = vpop.f32.mrb[0].mxu0
      %v530 = vadd.f32 %v220, %v529
      %v531 = vpop.f32.mrb[0].mxu0
      %v532 = vpop.f32.mrb[0].mxu0
      %v533 = vadd.f32 %v220, %v532
      %v534 = vpop.f32.mrb[0].mxu0
      %535 = vdwg.mxu0
      %vm536 = vcmp.gt.f32.partialorder %v410, 0.0
      %vm537 = vcmp.gt.f32.partialorder %v413, 0.0
      %vm538 = vcmp.gt.f32.partialorder %v418, 0.0
      %vm539 = vcmp.gt.f32.partialorder %v421, 0.0
      %vm540 = vcmp.gt.f32.partialorder %v426, 0.0
      %vm541 = vcmp.gt.f32.partialorder %v429, 0.0
      %vm542 = vcmp.gt.f32.partialorder %v434, 0.0
      %vm543 = vcmp.gt.f32.partialorder %v437, 0.0
      %vm544 = vcmp.gt.f32.partialorder %v442, 0.0
      %vm545 = vcmp.gt.f32.partialorder %v445, 0.0
      %vm546 = vcmp.gt.f32.partialorder %v450, 0.0
      %vm547 = vcmp.gt.f32.partialorder %v453, 0.0
      %vm548 = vcmp.gt.f32.partialorder %v458, 0.0
      %vm549 = vcmp.gt.f32.partialorder %v461, 0.0
      %vm550 = vcmp.gt.f32.partialorder %v466, 0.0
      %vm551 = vcmp.gt.f32.partialorder %v469, 0.0
      %vm552 = vcmp.gt.f32.partialorder %v474, 0.0
      %vm553 = vcmp.gt.f32.partialorder %v477, 0.0
      %vm554 = vcmp.gt.f32.partialorder %v482, 0.0
      %vm555 = vcmp.gt.f32.partialorder %v485, 0.0
      %vm556 = vcmp.gt.f32.partialorder %v490, 0.0
      %vm557 = vcmp.gt.f32.partialorder %v493, 0.0
      %vm558 = vcmp.gt.f32.partialorder %v498, 0.0
      %vm559 = vcmp.gt.f32.partialorder %v501, 0.0
      %vm560 = vcmp.gt.f32.partialorder %v506, 0.0
      %vm561 = vcmp.gt.f32.partialorder %v509, 0.0
      %vm562 = vcmp.gt.f32.partialorder %v514, 0.0
      %vm563 = vcmp.gt.f32.partialorder %v517, 0.0
      %vm564 = vcmp.gt.f32.partialorder %v522, 0.0
      %vm565 = vcmp.gt.f32.partialorder %v525, 0.0
      %vm566 = vcmp.gt.f32.partialorder %v530, 0.0
      %vm567 = vcmp.gt.f32.partialorder %v533, 0.0
      %v568 = vmul.f32 %v410, 0.2
      %v569 = vmul.f32 %v413, 0.2
      %v570 = vmul.f32 %v418, 0.2
      %v571 = vmul.f32 %v421, 0.2
      %v572 = vmul.f32 %v426, 0.2
      %v573 = vmul.f32 %v429, 0.2
      %v574 = vmul.f32 %v434, 0.2
      %v575 = vmul.f32 %v437, 0.2
      %v576 = vmul.f32 %v442, 0.2
      %v577 = vmul.f32 %v445, 0.2
      %v578 = vmul.f32 %v450, 0.2
      %v579 = vmul.f32 %v453, 0.2
      %v580 = vmul.f32 %v458, 0.2
      %v581 = vmul.f32 %v461, 0.2
      %v582 = vmul.f32 %v466, 0.2
      %v583 = vmul.f32 %v469, 0.2
      %v584 = vmul.f32 %v474, 0.2
      %v585 = vmul.f32 %v477, 0.2
      %v586 = vmul.f32 %v482, 0.2
      %v587 = vmul.f32 %v485, 0.2
      %v588 = vmul.f32 %v490, 0.2
      %v589 = vmul.f32 %v493, 0.2
      %v590 = vmul.f32 %v498, 0.2
      %v591 = vmul.f32 %v501, 0.2
      %v592 = vmul.f32 %v506, 0.2
      %v593 = vmul.f32 %v509, 0.2
      %v594 = vmul.f32 %v514, 0.2
      %v595 = vmul.f32 %v517, 0.2
      %v596 = vmul.f32 %v522, 0.2
      %v597 = vmul.f32 %v525, 0.2
      %v598 = vmul.f32 %v530, 0.2
      %v599 = vmul.f32 %v533, 0.2
      %v600 = vsel %vm536, %v410, %v568
      %v601 = vsel %vm537, %v413, %v569
      %v602 = vsel %vm538, %v418, %v570
      %v603 = vsel %vm539, %v421, %v571
      %v604 = vsel %vm540, %v426, %v572
      %v605 = vsel %vm541, %v429, %v573
      %v606 = vsel %vm542, %v434, %v574
      %v607 = vsel %vm543, %v437, %v575
      %v608 = vsel %vm544, %v442, %v576
      %v609 = vsel %vm545, %v445, %v577
      %v610 = vsel %vm546, %v450, %v578
      %v611 = vsel %vm547, %v453, %v579
      %v612 = vsel %vm548, %v458, %v580
      %v613 = vsel %vm549, %v461, %v581
      %v614 = vsel %vm550, %v466, %v582
      %v615 = vsel %vm551, %v469, %v583
      %v616 = vsel %vm552, %v474, %v584
      %v617 = vsel %vm553, %v477, %v585
      %v618 = vsel %vm554, %v482, %v586
      %v619 = vsel %vm555, %v485, %v587
      %v620 = vsel %vm556, %v490, %v588
      %v621 = vsel %vm557, %v493, %v589
      %v622 = vsel %vm558, %v498, %v590
      %v623 = vsel %vm559, %v501, %v591
      %v624 = vsel %vm560, %v506, %v592
      %v625 = vsel %vm561, %v509, %v593
      %v626 = vsel %vm562, %v514, %v594
      %v627 = vsel %vm563, %v517, %v595
      %v628 = vsel %vm564, %v522, %v596
      %v629 = vsel %vm565, %v525, %v597
      %v630 = vsel %vm566, %v530, %v598
      %v631 = vsel %vm567, %v533, %v599
      %v632 = vpack.c.bf16 %v601, %v600
      %v633 = vpack.c.bf16 %v603, %v602
      %v634 = vpack.c.bf16 %v605, %v604
      %v635 = vpack.c.bf16 %v607, %v606
      %v636 = vpack.c.bf16 %v609, %v608
      %v637 = vpack.c.bf16 %v611, %v610
      %v638 = vpack.c.bf16 %v613, %v612
      %v639 = vpack.c.bf16 %v615, %v614
      %v640 = vpack.c.bf16 %v617, %v616
      %v641 = vpack.c.bf16 %v619, %v618
      %v642 = vpack.c.bf16 %v621, %v620
      %v643 = vpack.c.bf16 %v623, %v622
      %v644 = vpack.c.bf16 %v625, %v624
      %v645 = vpack.c.bf16 %v627, %v626
      %v646 = vpack.c.bf16 %v629, %v628
      %v647 = vpack.c.bf16 %v631, %v630
      %v664 = vunpack.c.l.b16 %v632
      %v665 = vunpack.c.h.b16 %v632
      %v666 = vunpack.c.l.b16 %v633
      %v667 = vunpack.c.h.b16 %v633
      %v668 = vunpack.c.l.b16 %v634
      %v669 = vunpack.c.h.b16 %v634
      %v670 = vunpack.c.l.b16 %v635
      %v671 = vunpack.c.h.b16 %v635
      %v672 = vunpack.c.l.b16 %v636
      %v673 = vunpack.c.h.b16 %v636
      %v674 = vunpack.c.l.b16 %v637
      %v675 = vunpack.c.h.b16 %v637
      %v676 = vunpack.c.l.b16 %v638
      %v677 = vunpack.c.h.b16 %v638
      %v678 = vunpack.c.l.b16 %v639
      %v679 = vunpack.c.h.b16 %v639
      %v680 = vunpack.c.l.b16 %v640
      %v681 = vunpack.c.h.b16 %v640
      %v682 = vunpack.c.l.b16 %v641
      %v683 = vunpack.c.h.b16 %v641
      %v684 = vunpack.c.l.b16 %v642
      %v685 = vunpack.c.h.b16 %v642
      %v686 = vunpack.c.l.b16 %v643
      %v687 = vunpack.c.h.b16 %v643
      %v688 = vunpack.c.l.b16 %v644
      %v689 = vunpack.c.h.b16 %v644
      %v690 = vunpack.c.l.b16 %v645
      %v691 = vunpack.c.h.b16 %v645
      %v692 = vunpack.c.l.b16 %v646
      %v693 = vunpack.c.h.b16 %v646
      %v694 = vunpack.c.l.b16 %v647
      %v695 = vunpack.c.h.b16 %v647
      %v696 = vpack.c.b16 %v664, %v664
      %v697 = vpack.c.b16 %v665, %v665
      %v698 = vpack.c.b16 %v666, %v666
      %v699 = vpack.c.b16 %v667, %v667
      %v700 = vpack.c.b16 %v668, %v668
      %v701 = vpack.c.b16 %v669, %v669
      %v702 = vpack.c.b16 %v670, %v670
      %v703 = vpack.c.b16 %v671, %v671
      %v704 = vpack.c.b16 %v672, %v672
      %v705 = vpack.c.b16 %v673, %v673
      %v706 = vpack.c.b16 %v674, %v674
      %v707 = vpack.c.b16 %v675, %v675
      %v708 = vpack.c.b16 %v676, %v676
      %v709 = vpack.c.b16 %v677, %v677
      %v710 = vpack.c.b16 %v678, %v678
      %v711 = vpack.c.b16 %v679, %v679
      %v712 = vpack.c.b16 %v680, %v680
      %v713 = vpack.c.b16 %v681, %v681
      %v714 = vpack.c.b16 %v682, %v682
      %v715 = vpack.c.b16 %v683, %v683
      %v716 = vpack.c.b16 %v684, %v684
      %v717 = vpack.c.b16 %v685, %v685
      %v718 = vpack.c.b16 %v686, %v686
      %v719 = vpack.c.b16 %v687, %v687
      %v720 = vpack.c.b16 %v688, %v688
      %v721 = vpack.c.b16 %v689, %v689
      %v722 = vpack.c.b16 %v690, %v690
      %v723 = vpack.c.b16 %v691, %v691
      %v724 = vpack.c.b16 %v692, %v692
      %v725 = vpack.c.b16 %v693, %v693
      %v726 = vpack.c.b16 %v694, %v694
      %v727 = vpack.c.b16 %v695, %v695
      %vm760 = vcmask 125952
      %761 = vst.msk [vmem:[%s172] sm:$0xf] %vm760, %v696
      %762 = vst.msk [vmem:[%s172 + $0x4] sm:$0xf] %vm760, %v697
      %763 = vst.msk [vmem:[%s172 + $0x8] sm:$0xf] %vm760, %v698
      %764 = vst.msk [vmem:[%s172 + $0xc] sm:$0xf] %vm760, %v699
      %765 = vst.msk [vmem:[%s172 + $0x10] sm:$0xf] %vm760, %v700
      %766 = vst.msk [vmem:[%s172 + $0x14] sm:$0xf] %vm760, %v701
      %767 = vst.msk [vmem:[%s172 + $0x18] sm:$0xf] %vm760, %v702
      %768 = vst.msk [vmem:[%s172 + $0x1c] sm:$0xf] %vm760, %v703
      %769 = vst.msk [vmem:[%s172 + $0x20] sm:$0xf] %vm760, %v704
      %770 = vst.msk [vmem:[%s172 + $0x24] sm:$0xf] %vm760, %v705
      %771 = vst.msk [vmem:[%s172 + $0x28] sm:$0xf] %vm760, %v706
      %772 = vst.msk [vmem:[%s172 + $0x2c] sm:$0xf] %vm760, %v707
      %773 = vst.msk [vmem:[%s172 + $0x30] sm:$0xf] %vm760, %v708
      %774 = vst.msk [vmem:[%s172 + $0x34] sm:$0xf] %vm760, %v709
      %775 = vst.msk [vmem:[%s172 + $0x38] sm:$0xf] %vm760, %v710
      %776 = vst.msk [vmem:[%s172 + $0x3c] sm:$0xf] %vm760, %v711
      %777 = vst.msk [vmem:[%s172 + $0x40] sm:$0xf] %vm760, %v712
      %778 = vst.msk [vmem:[%s172 + $0x44] sm:$0xf] %vm760, %v713
      %779 = vst.msk [vmem:[%s172 + $0x48] sm:$0xf] %vm760, %v714
      %780 = vst.msk [vmem:[%s172 + $0x4c] sm:$0xf] %vm760, %v715
      %781 = vst.msk [vmem:[%s172 + $0x50] sm:$0xf] %vm760, %v716
      %782 = vst.msk [vmem:[%s172 + $0x54] sm:$0xf] %vm760, %v717
      %783 = vst.msk [vmem:[%s172 + $0x58] sm:$0xf] %vm760, %v718
      %784 = vst.msk [vmem:[%s172 + $0x5c] sm:$0xf] %vm760, %v719
      %785 = vst.msk [vmem:[%s172 + $0x60] sm:$0xf] %vm760, %v720
      %786 = vst.msk [vmem:[%s172 + $0x64] sm:$0xf] %vm760, %v721
      %787 = vst.msk [vmem:[%s172 + $0x68] sm:$0xf] %vm760, %v722
      %788 = vst.msk [vmem:[%s172 + $0x6c] sm:$0xf] %vm760, %v723
      %789 = vst.msk [vmem:[%s172 + $0x70] sm:$0xf] %vm760, %v724
      %790 = vst.msk [vmem:[%s172 + $0x74] sm:$0xf] %vm760, %v725
      %791 = vst.msk [vmem:[%s172 + $0x78] sm:$0xf] %vm760, %v726
      %792 = vst.msk [vmem:[%s172 + $0x7c] sm:$0xf] %vm760, %v727
      %s793 = smul.u32 32, %s14
      %p794 = scmp.lt.s32.totalorder %s793, 63
      %s795 = scalar_select %p794, %s793, 63
      %s796 = smul.addr %s795, 4
      %s797 = scalar_lea.vmem %s3, %s796
      // Predicated region
      $region33: #{tpu_custom_call.1} parent=31 // pred_check
        %p798 = pneg %p100
      $region34: #{tpu_custom_call.1} parent=31 // pred_check_branch
        %800 = sbr.rel (%p798) target = $region36
      $region35: #{tpu_custom_call.1} parent=31 // pred_region
        %s801 = smul.u32 32, %s14
      $region36: #{tpu_custom_call.1} parent=31 // pred_fallthru
        _
    $region32: #{tpu_custom_call.1} parent=5 // pred_fallthru
      _
    %p802 = scmp.le.s32.totalorder 2, %s9
    // Predicated region
    $region37: #{tpu_custom_call.1} parent=5 // pred_check
      %p803 = pneg %p802
    $region38: #{tpu_custom_call.1} parent=5 // pred_check_branch
      %805 = sbr.rel (%p803) target = $region40
    $region39: #{tpu_custom_call.1} parent=5 // pred_region
      %s806 = ssub.s32 %s9, 2
      // Predicated region
      $region41: #{tpu_custom_call.1} parent=39 // pred_check
        %p807 = pneg %p106
      $region42: #{tpu_custom_call.1} parent=39 // pred_check_branch
        %809 = sbr.rel (%p807) target = $region44
      $region43: #{tpu_custom_call.1} parent=39 // pred_region
        %s810 = smul.u32 32, %s15
        %p811 = scmp.lt.s32.totalorder %s810, 63
        %s812 = scalar_select %p811, %s810, 63
        %s813 = smul.addr %s812, 4
        %s814 = scalar_lea.vmem %s3, %s813
      $region44: #{tpu_custom_call.1} parent=39 // pred_fallthru
        _
    $region40: #{tpu_custom_call.1} parent=5 // pred_fallthru
      _
  $region6: #{tpu_custom_call.1} parent=0 // loop_footer
    %s13 = sadd.s32 1, %s9
  $region7: #{tpu_custom_call.1} parent=0 // loop_footer_branch
    %8 = sbr.rel target = $region3
  $region8: #{tpu_custom_call.1} parent=0 // loop_exit
    _

</llo_original>
